<compile_context>
chip_gen: v6e
topology: v6e:2x2x1
jax: 0.10.0
libtpu: 0.0.40
codegen_flags: <defaults>
</compile_context>

<pallas_src>
import functools

import jax
import jax.numpy as jnp
from jax.experimental import pallas as pl
from jax.experimental.pallas import tpu as pltpu

B, S, H, V = 2, 8, 128, 128   # batch, sequence length, hidden, vocab
T_DEC = S - 1                 # 7 decoder positions produced by src_forward
T_PAD = 8                     # decoder positions padded to the 8-sublane tile
ROWS = B * T_PAD              # 16-row lane-dense MLP slab
ROWS2 = 2 * ROWS              # greedy + sampled stacked
AUX_ROWS = 40                 # 32 token ids + 4 disc preds + 4 pad rows


# ------------------------------ kernel helpers ------------------------------

def _mxu(a, b):
    """MXU matmul with bf16 operands and f32 accumulation."""
    return jnp.dot(a.astype(jnp.bfloat16), b.astype(jnp.bfloat16),
                   preferred_element_type=jnp.float32)


def _argmax_lanes(x):
    """Lowest-index argmax over the 128-lane axis -> [rows, 1] float32."""
    n = x.shape[-1]
    lane = jax.lax.broadcasted_iota(jnp.int32, x.shape, x.ndim - 1)
    lane = lane.astype(jnp.float32)
    m = jnp.max(x, axis=-1, keepdims=True)
    return jnp.min(jnp.where(x == m, lane, jnp.float32(n)),
                   axis=-1, keepdims=True)


def _pool_rows(x, group):
    """Sum consecutive groups of `group` sublane rows: (G*group, C) -> (G, C)."""
    return jnp.concatenate(
        [jnp.sum(x[g * group:(g + 1) * group, :], axis=0, keepdims=True)
         for g in range(x.shape[0] // group)], axis=0)


def _rep_rows(x, n):
    """Repeat each sublane row n times: (R, C) -> (R*n, C)."""
    return jnp.concatenate(
        [jnp.broadcast_to(x[r:r + 1, :], (n, x.shape[1]))
         for r in range(x.shape[0])], axis=0)


# ------------------------------- fused kernel -------------------------------
# wsq stack  : 0=s_emb_in 1=s_w1 2=s_w2 3=t_emb_dec 4=t_w1 5=t_w2   [6,128,128]
# wdc        : [s_demb | t_emb_in]                                  [128,256]
# small slab : rows 0..7 s_pos, 8 s_b1, 9 s_b2, 10 s_wd, 11 t_b1, 12 t_b2
# tok column : rows 0..15 input-seq tokens, rows 16..31 teacher-forced dec tokens

def _cycle_gan_kernel(tok_ref, gum_ref, wsq_ref, wdc_ref, small_ref, bd_ref,
                      out_ref, aux_ref):
    # --- all token one-hots from ONE lane compare ---------------------------
    lane_i = jax.lax.broadcasted_iota(jnp.int32, (ROWS2, V), 1)
    lane_f = lane_i.astype(jnp.float32)
    tok_oh = jnp.where(lane_i == tok_ref[...], 1.0, 0.0)          # [32, V]
    seq_oh = tok_oh[:B * S, :]                                    # input tokens
    dec_oh = tok_oh[B * S:, :]                                    # trg dec tokens

    # --- src encoder: mean-pooled embeddings of the input sequence ----------
    pooled_in = _pool_rows(seq_oh, S) * (1.0 / S)                 # [B, V]
    ctx_s = _mxu(pooled_in, wsq_ref[0])                           # [B, H]

    # --- src decoder MLP over one lane-dense [16, 128] slab ------------------
    pos = small_ref[0:T_PAD, :]
    x = _rep_rows(ctx_s, T_PAD) + jnp.concatenate([pos, pos], axis=0)
    h = jnp.tanh(_mxu(x, wsq_ref[1]) + small_ref[8:9, :])
    logits = _mxu(h, wsq_ref[2]) + small_ref[9:10, :]             # [ROWS, V]
    out_ref[0:ROWS, :] = logits

    # --- greedy + Gumbel-max sampled tokens: ONE fused argmax pass ----------
    stacked = jnp.concatenate([logits, logits + gum_ref[...]], axis=0)  # [32, V]
    idx = _argmax_lanes(stacked)          # [32,1] f32: rows 0..15 greedy, 16..31 samp

    # --- discriminator on [bos] + tokens, both sequences in one pass --------
    sub = jax.lax.broadcasted_iota(jnp.int32, (ROWS2, 1), 0)
    valid = (sub & (T_PAD - 1)) < T_DEC                           # mask pad rows
    oh_both = jnp.where((lane_f == idx) & valid, 1.0, 0.0)        # [32, V]
    bos_oh = jnp.where(
        jax.lax.broadcasted_iota(jnp.int32, (2 * B, V), 1) == 0, 1.0, 0.0)
    pooled_both = (_pool_rows(oh_both, T_PAD) + bos_oh) * (1.0 / S)  # [2B, V]

    # disc features and trg-encoder context from one 256-wide MXU matmul
    big = _mxu(pooled_both, wdc_ref[...])                         # [2B, 2H]
    feat = big[:, :H]                                             # disc features
    ctx_t = big[B:, H:]                                           # trg ctx (sampled seq)
    preds = jnp.sum(feat * small_ref[10:11, :], axis=-1,
                    keepdims=True) + bd_ref[...]                  # [2B, 1]

    # --- trg gen_model (cycle direction), teacher-forced --------------------
    dec = _mxu(dec_oh, wsq_ref[3])                                # [ROWS, H]
    h2 = jnp.tanh(_mxu(_rep_rows(ctx_t, T_PAD) + dec, wsq_ref[4])
                  + small_ref[11:12, :])
    out_ref[ROWS:ROWS2, :] = _mxu(h2, wsq_ref[5]) + small_ref[12:13, :]

    # --- all tiny scalars in one padded column output ------------------------
    aux_ref[...] = jnp.concatenate(
        [idx, preds,
         jnp.zeros((AUX_ROWS - ROWS2 - 2 * B, 1), jnp.float32)], axis=0)


def _vmem():
    return pl.BlockSpec(memory_space=pltpu.MemorySpace.VMEM)


_cycle_call = pl.pallas_call(
    _cycle_gan_kernel,
    out_shape=(
        jax.ShapeDtypeStruct((ROWS2, V), jnp.float32),     # src logits | cycle logits
        jax.ShapeDtypeStruct((AUX_ROWS, 1), jnp.float32),  # greedy ids | samp ids | disc preds
    ),
    in_specs=[_vmem() for _ in range(6)],
    out_specs=(_vmem(), _vmem()),
    cost_estimate=pl.CostEstimate(
        flops=2_600_000, transcendentals=4_096, bytes_accessed=620_000),
)


# ----------------------------- synthetic GAN --------------------------------

def init_gan_params(key):
    ks = jax.random.split(key, 7)
    s = 0.05
    return dict(
        emb_in=jax.random.normal(ks[0], (V, H), jnp.float32) * s,
        emb_dec=jax.random.normal(ks[1], (V, H), jnp.float32) * s,
        pos=jax.random.normal(ks[2], (T_PAD, H), jnp.float32) * s,  # row 7 is pad
        w1=jax.random.normal(ks[3], (H, H), jnp.float32) * s,
        b1=jnp.zeros((1, H), jnp.float32),
        w2=jax.random.normal(ks[4], (H, V), jnp.float32) * s,
        b2=jnp.zeros((1, V), jnp.float32),
        disc_emb=jax.random.normal(ks[5], (V, H), jnp.float32) * s,
        wd=jax.random.normal(ks[6], (1, H), jnp.float32) * s,        # row vector
        bd=jnp.zeros((1, 1), jnp.float32),
    )


# --------------------------- CycleGAN.forward -------------------------------

@functools.partial(jax.jit, static_argnames=("reverse",))
def cycle_gan_forward(src_params, trg_params, input_sequence, rng_key,
                      reverse=False):
    """Mirrors CycleGAN.forward.

    The greedy baseline pass in the reference recomputes exactly the same
    logits as the sampling pass, so a single in-kernel logits pass feeds both
    the sampled and greedy token sequences; only the discriminator head (and
    its pooled one-hot) runs for both, fused into one wide pass.
    """
    src_p, trg_p = (trg_params, src_params) if reverse else (src_params, trg_params)

    # ---- layout plumbing: pack weights into a few big DMAs ----------------
    wsq = jnp.stack([src_p['emb_in'], src_p['w1'], src_p['w2'],
                     trg_p['emb_dec'], trg_p['w1'], trg_p['w2']], axis=0)
    wdc = jnp.concatenate([src_p['disc_emb'], trg_p['emb_in']], axis=1)   # [V, 2H]
    small = jnp.concatenate([src_p['pos'], src_p['b1'], src_p['b2'],
                             src_p['wd'], trg_p['b1'], trg_p['b2'],
                             jnp.zeros((3, H), jnp.float32)], axis=0)     # [16, H]

    # ---- token columns: input sequence + teacher-forced decoder tokens ----
    seq = input_sequence.astype(jnp.int32)
    dec_tok = jnp.pad(seq[:, 1:], ((0, 0), (0, T_PAD - T_DEC)))           # [B, T_PAD]
    tok_col = jnp.concatenate([seq.reshape(B * S, 1),
                               dec_tok.reshape(ROWS, 1)], axis=0)         # [32, 1]

    # Gumbel noise from the host-side PRNG (no TPU-only PRNG primitives).
    gumbel = jax.random.gumbel(rng_key, (ROWS, V), jnp.float32)

    out, aux = _cycle_call(tok_col, gumbel, wsq, wdc, small, src_p['bd'])

    logits = out[:ROWS].reshape(B, T_PAD, V)[:, :T_DEC, :]
    reversed_logits = out[ROWS:].reshape(B, T_PAD, V)[:, :T_DEC, :]

    ids = aux[:ROWS2, 0].astype(jnp.int32)
    greedy_tok = ids[:ROWS].reshape(B, T_PAD)[:, :T_DEC]
    samp_tok = ids[ROWS:].reshape(B, T_PAD)[:, :T_DEC]
    preds = aux[ROWS2:ROWS2 + 2 * B, 0]
    disc_g, disc_s = preds[:B], preds[B:]

    bos = jnp.zeros((B, 1), jnp.int32)
    result_sequence = jnp.concatenate([bos, samp_tok], axis=1)
    baseline_result_sequence = jnp.concatenate([bos, greedy_tok], axis=1)

    return (disc_s, result_sequence, logits,
            disc_g, baseline_result_sequence, reversed_logits)


# ---------------------------------- main -------------------------------------

if __name__ == "__main__":
    key = jax.random.PRNGKey(0)
    k_src, k_trg, k_inp, k_rng = jax.random.split(key, 4)

    src_params = init_gan_params(k_src)
    trg_params = init_gan_params(k_trg)

    input_sequence = jax.random.randint(k_inp, (B, S), 0, V, dtype=jnp.int32)

    out = cycle_gan_forward(src_params, trg_params, input_sequence, k_rng,
                            reverse=False)
    out = jax.block_until_ready(out)

    (disc_pred, result_seq, logits,
     base_disc_pred, base_result_seq, reversed_logits) = out

    assert disc_pred.shape == (B,)
    assert result_seq.shape == (B, S)
    assert logits.shape == (B, T_DEC, V)
    assert base_disc_pred.shape == (B,)
    assert base_result_seq.shape == (B, S)
    assert reversed_logits.shape == (B, T_DEC, V)

    # structural sanity: bos column, token range, greedy == argmax(logits)
    assert bool(jnp.all(result_seq[:, 0] == 0))
    assert bool(jnp.all(base_result_seq[:, 0] == 0))
    assert bool(jnp.all((result_seq >= 0) & (result_seq < V)))
    assert bool(jnp.all((base_result_seq >= 0) & (base_result_seq < V)))
    assert bool(jnp.all(base_result_seq[:, 1:] == jnp.argmax(logits, axis=-1)))
    for t in (disc_pred, base_disc_pred, logits, reversed_logits):
        assert bool(jnp.isfinite(jnp.asarray(t)).all())

    print("KERNEL_OK")
</pallas_src>

<mosaic_0001>
module attributes {stable_mosaic.version = 11 : i64} {
  func.func @_cycle_gan_kernel(%arg0: memref<32x1xi32, #tpu.memory_space<vmem>>, %arg1: memref<16x128xf32, #tpu.memory_space<vmem>>, %arg2: memref<6x128x128xf32, #tpu.memory_space<vmem>>, %arg3: memref<128x256xf32, #tpu.memory_space<vmem>>, %arg4: memref<16x128xf32, #tpu.memory_space<vmem>>, %arg5: memref<1x1xf32, #tpu.memory_space<vmem>>, %arg6: memref<32x128xf32, #tpu.memory_space<vmem>>, %arg7: memref<40x1xf32, #tpu.memory_space<vmem>>) attributes {dimension_semantics = [], scalar_prefetch = 0 : i64, scratch_operands = 0 : i64, tpu.core_type = #tpu.core_type<tc>} {
    %0 = tpu.iota {dimensions = array<i32: 1>} : vector<32x128xi32>
    %1 = arith.sitofp %0 : vector<32x128xi32> to vector<32x128xf32>
    %c0 = arith.constant 0 : index
    %c0_0 = arith.constant 0 : index
    %2 = vector.load %arg0[%c0, %c0_0] : memref<32x1xi32, #tpu.memory_space<vmem>>, vector<32x1xi32>
    %3 = vector.broadcast %2 : vector<32x1xi32> to vector<32x128xi32>
    %4 = arith.cmpi eq, %0, %3 : vector<32x128xi32>
    %cst = arith.constant 1.000000e+00 : f32
    %cst_1 = arith.constant 0.000000e+00 : f32
    %5 = vector.broadcast %cst : f32 to vector<32x128xf32>
    %6 = vector.broadcast %cst_1 : f32 to vector<32x128xf32>
    %7 = arith.select %4, %5, %6 : vector<32x128xi1>, vector<32x128xf32>
    %8 = vector.extract_strided_slice %7 {offsets = [0, 0], sizes = [16, 128], strides = [1, 1]} : vector<32x128xf32> to vector<16x128xf32>
    %9 = vector.extract_strided_slice %7 {offsets = [16, 0], sizes = [16, 128], strides = [1, 1]} : vector<32x128xf32> to vector<16x128xf32>
    %10 = vector.extract_strided_slice %8 {offsets = [0, 0], sizes = [8, 128], strides = [1, 1]} : vector<16x128xf32> to vector<8x128xf32>
    %cst_2 = arith.constant dense<0.000000e+00> : vector<128xf32>
    %11 = vector.multi_reduction <add>, %10, %cst_2 [0] : vector<8x128xf32> to vector<128xf32>
    %12 = vector.shape_cast %11 : vector<128xf32> to vector<1x128xf32>
    %13 = vector.extract_strided_slice %8 {offsets = [8, 0], sizes = [8, 128], strides = [1, 1]} : vector<16x128xf32> to vector<8x128xf32>
    %cst_3 = arith.constant dense<0.000000e+00> : vector<128xf32>
    %14 = vector.multi_reduction <add>, %13, %cst_3 [0] : vector<8x128xf32> to vector<128xf32>
    %15 = vector.shape_cast %14 : vector<128xf32> to vector<1x128xf32>
    %16 = tpu.concatenate %12, %15 in 0 : vector<1x128xf32>, vector<1x128xf32> -> vector<2x128xf32>
    %cst_4 = arith.constant 1.250000e-01 : f32
    %17 = vector.broadcast %cst_4 : f32 to vector<2x128xf32>
    %18 = arith.mulf %16, %17 : vector<2x128xf32>
    %c0_5 = arith.constant 0 : index
    %c0_6 = arith.constant 0 : index
    %c0_7 = arith.constant 0 : index
    %19 = vector.load %arg2[%c0_5, %c0_6, %c0_7] : memref<6x128x128xf32, #tpu.memory_space<vmem>>, vector<1x128x128xf32>
    %20 = vector.shape_cast %19 : vector<1x128x128xf32> to vector<128x128xf32>
    %21 = arith.truncf %18 : vector<2x128xf32> to vector<2x128xbf16>
    %22 = arith.truncf %20 : vector<128x128xf32> to vector<128x128xbf16>
    %cst_8 = arith.constant dense<0.000000e+00> : vector<2x128xf32>
    %23 = tpu.matmul %21, %22, %cst_8 {dimension_numbers = #tpu.dot_dimension_numbers<[1], [0], [0], [1], [0, 0, 1, 1], [], []>} : vector<2x128xbf16>, vector<128x128xbf16>, vector<2x128xf32> -> vector<2x128xf32>
    %c0_9 = arith.constant 0 : index
    %c0_10 = arith.constant 0 : index
    %24 = vector.load %arg4[%c0_9, %c0_10] : memref<16x128xf32, #tpu.memory_space<vmem>>, vector<8x128xf32>
    %25 = vector.extract_strided_slice %23 {offsets = [0, 0], sizes = [1, 128], strides = [1, 1]} : vector<2x128xf32> to vector<1x128xf32>
    %26 = vector.shape_cast %25 : vector<1x128xf32> to vector<1x128xf32>
    %27 = vector.broadcast %26 : vector<1x128xf32> to vector<8x128xf32>
    %28 = vector.extract_strided_slice %23 {offsets = [1, 0], sizes = [1, 128], strides = [1, 1]} : vector<2x128xf32> to vector<1x128xf32>
    %29 = vector.shape_cast %28 : vector<1x128xf32> to vector<1x128xf32>
    %30 = vector.broadcast %29 : vector<1x128xf32> to vector<8x128xf32>
    %31 = tpu.concatenate %27, %30 in 0 : vector<8x128xf32>, vector<8x128xf32> -> vector<16x128xf32>
    %32 = tpu.concatenate %24, %24 in 0 : vector<8x128xf32>, vector<8x128xf32> -> vector<16x128xf32>
    %33 = arith.addf %31, %32 : vector<16x128xf32>
    %c1 = arith.constant 1 : index
    %c0_11 = arith.constant 0 : index
    %c0_12 = arith.constant 0 : index
    %34 = vector.load %arg2[%c1, %c0_11, %c0_12] : memref<6x128x128xf32, #tpu.memory_space<vmem>>, vector<1x128x128xf32>
    %35 = vector.shape_cast %34 : vector<1x128x128xf32> to vector<128x128xf32>
    %36 = arith.truncf %33 : vector<16x128xf32> to vector<16x128xbf16>
    %37 = arith.truncf %35 : vector<128x128xf32> to vector<128x128xbf16>
    %cst_13 = arith.constant dense<0.000000e+00> : vector<16x128xf32>
    %38 = tpu.matmul %36, %37, %cst_13 {dimension_numbers = #tpu.dot_dimension_numbers<[1], [0], [0], [1], [0, 0, 1, 1], [], []>} : vector<16x128xbf16>, vector<128x128xbf16>, vector<16x128xf32> -> vector<16x128xf32>
    %c8 = arith.constant 8 : index
    %c0_14 = arith.constant 0 : index
    %39 = vector.load %arg4[%c8, %c0_14] : memref<16x128xf32, #tpu.memory_space<vmem>>, vector<1x128xf32>
    %40 = vector.broadcast %39 : vector<1x128xf32> to vector<16x128xf32>
    %41 = arith.addf %38, %40 : vector<16x128xf32>
    %42 = math.tanh %41 : vector<16x128xf32>
    %c2 = arith.constant 2 : index
    %c0_15 = arith.constant 0 : index
    %c0_16 = arith.constant 0 : index
    %43 = vector.load %arg2[%c2, %c0_15, %c0_16] : memref<6x128x128xf32, #tpu.memory_space<vmem>>, vector<1x128x128xf32>
    %44 = vector.shape_cast %43 : vector<1x128x128xf32> to vector<128x128xf32>
    %45 = arith.truncf %42 : vector<16x128xf32> to vector<16x128xbf16>
    %46 = arith.truncf %44 : vector<128x128xf32> to vector<128x128xbf16>
    %cst_17 = arith.constant dense<0.000000e+00> : vector<16x128xf32>
    %47 = tpu.matmul %45, %46, %cst_17 {dimension_numbers = #tpu.dot_dimension_numbers<[1], [0], [0], [1], [0, 0, 1, 1], [], []>} : vector<16x128xbf16>, vector<128x128xbf16>, vector<16x128xf32> -> vector<16x128xf32>
    %c9 = arith.constant 9 : index
    %c0_18 = arith.constant 0 : index
    %48 = vector.load %arg4[%c9, %c0_18] : memref<16x128xf32, #tpu.memory_space<vmem>>, vector<1x128xf32>
    %49 = vector.broadcast %48 : vector<1x128xf32> to vector<16x128xf32>
    %50 = arith.addf %47, %49 : vector<16x128xf32>
    %c0_19 = arith.constant 0 : index
    %c0_20 = arith.constant 0 : index
    %51 = vector.load %arg6[%c0_19, %c0_20] : memref<32x128xf32, #tpu.memory_space<vmem>>, vector<16x128xf32>
    tpu.vector_store %arg6[%c0_19, %c0_20], %50 {strides = array<i32>} : memref<32x128xf32, #tpu.memory_space<vmem>>, vector<16x128xf32>,
    %c0_21 = arith.constant 0 : index
    %c0_22 = arith.constant 0 : index
    %52 = vector.load %arg1[%c0_21, %c0_22] : memref<16x128xf32, #tpu.memory_space<vmem>>, vector<16x128xf32>
    %53 = arith.addf %50, %52 : vector<16x128xf32>
    %54 = tpu.concatenate %50, %53 in 0 : vector<16x128xf32>, vector<16x128xf32> -> vector<32x128xf32>
    %55 = tpu.iota {dimensions = array<i32: 1>} : vector<32x128xi32>
    %56 = arith.sitofp %55 : vector<32x128xi32> to vector<32x128xf32>
    %cst_23 = arith.constant dense<0xFF800000> : vector<32xf32>
    %57 = vector.multi_reduction <maximumf>, %54, %cst_23 [1] : vector<32x128xf32> to vector<32xf32>
    %58 = vector.shape_cast %57 : vector<32xf32> to vector<32x1xf32>
    %59 = vector.broadcast %58 : vector<32x1xf32> to vector<32x128xf32>
    %60 = arith.cmpf oeq, %54, %59 : vector<32x128xf32>
    %cst_24 = arith.constant 1.280000e+02 : f32
    %61 = vector.broadcast %cst_24 : f32 to vector<32x128xf32>
    %62 = arith.select %60, %56, %61 : vector<32x128xi1>, vector<32x128xf32>
    %cst_25 = arith.constant dense<0x7F800000> : vector<32xf32>
    %63 = vector.multi_reduction <minimumf>, %62, %cst_25 [1] : vector<32x128xf32> to vector<32xf32>
    %64 = vector.shape_cast %63 : vector<32xf32> to vector<32x1xf32>
    %65 = tpu.iota {dimensions = array<i32: 0>} : vector<32x1xi32>
    %c7_i32 = arith.constant 7 : i32
    %66 = vector.broadcast %c7_i32 : i32 to vector<32x1xi32>
    %67 = arith.andi %65, %66 : vector<32x1xi32>
    %c7_i32_26 = arith.constant 7 : i32
    %68 = vector.broadcast %c7_i32_26 : i32 to vector<32x1xi32>
    %69 = arith.cmpi slt, %67, %68 : vector<32x1xi32>
    %70 = vector.broadcast %64 : vector<32x1xf32> to vector<32x128xf32>
    %71 = arith.cmpf oeq, %1, %70 : vector<32x128xf32>
    %72 = vector.broadcast %69 : vector<32x1xi1> to vector<32x128xi1>
    %73 = arith.andi %71, %72 : vector<32x128xi1>
    %cst_27 = arith.constant 1.000000e+00 : f32
    %cst_28 = arith.constant 0.000000e+00 : f32
    %74 = vector.broadcast %cst_27 : f32 to vector<32x128xf32>
    %75 = vector.broadcast %cst_28 : f32 to vector<32x128xf32>
    %76 = arith.select %73, %74, %75 : vector<32x128xi1>, vector<32x128xf32>
    %77 = tpu.iota {dimensions = array<i32: 1>} : vector<4x128xi32>
    %c0_i32 = arith.constant 0 : i32
    %78 = vector.broadcast %c0_i32 : i32 to vector<4x128xi32>
    %79 = arith.cmpi eq, %77, %78 : vector<4x128xi32>
    %cst_29 = arith.constant 1.000000e+00 : f32
    %cst_30 = arith.constant 0.000000e+00 : f32
    %80 = vector.broadcast %cst_29 : f32 to vector<4x128xf32>
    %81 = vector.broadcast %cst_30 : f32 to vector<4x128xf32>
    %82 = arith.select %79, %80, %81 : vector<4x128xi1>, vector<4x128xf32>
    %83 = vector.extract_strided_slice %76 {offsets = [0, 0], sizes = [8, 128], strides = [1, 1]} : vector<32x128xf32> to vector<8x128xf32>
    %cst_31 = arith.constant dense<0.000000e+00> : vector<128xf32>
    %84 = vector.multi_reduction <add>, %83, %cst_31 [0] : vector<8x128xf32> to vector<128xf32>
    %85 = vector.shape_cast %84 : vector<128xf32> to vector<1x128xf32>
    %86 = vector.extract_strided_slice %76 {offsets = [8, 0], sizes = [8, 128], strides = [1, 1]} : vector<32x128xf32> to vector<8x128xf32>
    %cst_32 = arith.constant dense<0.000000e+00> : vector<128xf32>
    %87 = vector.multi_reduction <add>, %86, %cst_32 [0] : vector<8x128xf32> to vector<128xf32>
    %88 = vector.shape_cast %87 : vector<128xf32> to vector<1x128xf32>
    %89 = vector.extract_strided_slice %76 {offsets = [16, 0], sizes = [8, 128], strides = [1, 1]} : vector<32x128xf32> to vector<8x128xf32>
    %cst_33 = arith.constant dense<0.000000e+00> : vector<128xf32>
    %90 = vector.multi_reduction <add>, %89, %cst_33 [0] : vector<8x128xf32> to vector<128xf32>
    %91 = vector.shape_cast %90 : vector<128xf32> to vector<1x128xf32>
    %92 = vector.extract_strided_slice %76 {offsets = [24, 0], sizes = [8, 128], strides = [1, 1]} : vector<32x128xf32> to vector<8x128xf32>
    %cst_34 = arith.constant dense<0.000000e+00> : vector<128xf32>
    %93 = vector.multi_reduction <add>, %92, %cst_34 [0] : vector<8x128xf32> to vector<128xf32>
    %94 = vector.shape_cast %93 : vector<128xf32> to vector<1x128xf32>
    %95 = tpu.concatenate %85, %88, %91, %94 in 0 : vector<1x128xf32>, vector<1x128xf32>, vector<1x128xf32>, vector<1x128xf32> -> vector<4x128xf32>
    %96 = arith.addf %95, %82 : vector<4x128xf32>
    %cst_35 = arith.constant 1.250000e-01 : f32
    %97 = vector.broadcast %cst_35 : f32 to vector<4x128xf32>
    %98 = arith.mulf %96, %97 : vector<4x128xf32>
    %c0_36 = arith.constant 0 : index
    %c0_37 = arith.constant 0 : index
    %99 = vector.load %arg3[%c0_36, %c0_37] : memref<128x256xf32, #tpu.memory_space<vmem>>, vector<128x256xf32>
    %100 = arith.truncf %98 : vector<4x128xf32> to vector<4x128xbf16>
    %101 = arith.truncf %99 : vector<128x256xf32> to vector<128x256xbf16>
    %cst_38 = arith.constant dense<0.000000e+00> : vector<4x256xf32>
    %102 = tpu.matmul %100, %101, %cst_38 {dimension_numbers = #tpu.dot_dimension_numbers<[1], [0], [0], [1], [0, 0, 1, 1], [], []>} : vector<4x128xbf16>, vector<128x256xbf16>, vector<4x256xf32> -> vector<4x256xf32>
    %103 = vector.extract_strided_slice %102 {offsets = [0, 0], sizes = [4, 128], strides = [1, 1]} : vector<4x256xf32> to vector<4x128xf32>
    %104 = vector.extract_strided_slice %102 {offsets = [2, 128], sizes = [2, 128], strides = [1, 1]} : vector<4x256xf32> to vector<2x128xf32>
    %c10 = arith.constant 10 : index
    %c0_39 = arith.constant 0 : index
    %105 = vector.load %arg4[%c10, %c0_39] : memref<16x128xf32, #tpu.memory_space<vmem>>, vector<1x128xf32>
    %106 = vector.broadcast %105 : vector<1x128xf32> to vector<4x128xf32>
    %107 = arith.mulf %103, %106 : vector<4x128xf32>
    %cst_40 = arith.constant dense<0.000000e+00> : vector<4xf32>
    %108 = vector.multi_reduction <add>, %107, %cst_40 [1] : vector<4x128xf32> to vector<4xf32>
    %109 = vector.shape_cast %108 : vector<4xf32> to vector<4x1xf32>
    %c0_41 = arith.constant 0 : index
    %c0_42 = arith.constant 0 : index
    %110 = vector.load %arg5[%c0_41, %c0_42] : memref<1x1xf32, #tpu.memory_space<vmem>>, vector<1x1xf32>
    %111 = vector.broadcast %110 : vector<1x1xf32> to vector<4x1xf32>
    %112 = arith.addf %109, %111 : vector<4x1xf32>
    %c3 = arith.constant 3 : index
    %c0_43 = arith.constant 0 : index
    %c0_44 = arith.constant 0 : index
    %113 = vector.load %arg2[%c3, %c0_43, %c0_44] : memref<6x128x128xf32, #tpu.memory_space<vmem>>, vector<1x128x128xf32>
    %114 = vector.shape_cast %113 : vector<1x128x128xf32> to vector<128x128xf32>
    %115 = arith.truncf %9 : vector<16x128xf32> to vector<16x128xbf16>
    %116 = arith.truncf %114 : vector<128x128xf32> to vector<128x128xbf16>
    %cst_45 = arith.constant dense<0.000000e+00> : vector<16x128xf32>
    %117 = tpu.matmul %115, %116, %cst_45 {dimension_numbers = #tpu.dot_dimension_numbers<[1], [0], [0], [1], [0, 0, 1, 1], [], []>} : vector<16x128xbf16>, vector<128x128xbf16>, vector<16x128xf32> -> vector<16x128xf32>
    %118 = vector.extract_strided_slice %104 {offsets = [0, 0], sizes = [1, 128], strides = [1, 1]} : vector<2x128xf32> to vector<1x128xf32>
    %119 = vector.shape_cast %118 : vector<1x128xf32> to vector<1x128xf32>
    %120 = vector.broadcast %119 : vector<1x128xf32> to vector<8x128xf32>
    %121 = vector.extract_strided_slice %104 {offsets = [1, 0], sizes = [1, 128], strides = [1, 1]} : vector<2x128xf32> to vector<1x128xf32>
    %122 = vector.shape_cast %121 : vector<1x128xf32> to vector<1x128xf32>
    %123 = vector.broadcast %122 : vector<1x128xf32> to vector<8x128xf32>
    %124 = tpu.concatenate %120, %123 in 0 : vector<8x128xf32>, vector<8x128xf32> -> vector<16x128xf32>
    %125 = arith.addf %124, %117 : vector<16x128xf32>
    %c4 = arith.constant 4 : index
    %c0_46 = arith.constant 0 : index
    %c0_47 = arith.constant 0 : index
    %126 = vector.load %arg2[%c4, %c0_46, %c0_47] : memref<6x128x128xf32, #tpu.memory_space<vmem>>, vector<1x128x128xf32>
    %127 = vector.shape_cast %126 : vector<1x128x128xf32> to vector<128x128xf32>
    %128 = arith.truncf %125 : vector<16x128xf32> to vector<16x128xbf16>
    %129 = arith.truncf %127 : vector<128x128xf32> to vector<128x128xbf16>
    %cst_48 = arith.constant dense<0.000000e+00> : vector<16x128xf32>
    %130 = tpu.matmul %128, %129, %cst_48 {dimension_numbers = #tpu.dot_dimension_numbers<[1], [0], [0], [1], [0, 0, 1, 1], [], []>} : vector<16x128xbf16>, vector<128x128xbf16>, vector<16x128xf32> -> vector<16x128xf32>
    %c11 = arith.constant 11 : index
    %c0_49 = arith.constant 0 : index
    %131 = vector.load %arg4[%c11, %c0_49] : memref<16x128xf32, #tpu.memory_space<vmem>>, vector<1x128xf32>
    %132 = vector.broadcast %131 : vector<1x128xf32> to vector<16x128xf32>
    %133 = arith.addf %130, %132 : vector<16x128xf32>
    %134 = math.tanh %133 : vector<16x128xf32>
    %c5 = arith.constant 5 : index
    %c0_50 = arith.constant 0 : index
    %c0_51 = arith.constant 0 : index
    %135 = vector.load %arg2[%c5, %c0_50, %c0_51] : memref<6x128x128xf32, #tpu.memory_space<vmem>>, vector<1x128x128xf32>
    %136 = vector.shape_cast %135 : vector<1x128x128xf32> to vector<128x128xf32>
    %137 = arith.truncf %134 : vector<16x128xf32> to vector<16x128xbf16>
    %138 = arith.truncf %136 : vector<128x128xf32> to vector<128x128xbf16>
    %cst_52 = arith.constant dense<0.000000e+00> : vector<16x128xf32>
    %139 = tpu.matmul %137, %138, %cst_52 {dimension_numbers = #tpu.dot_dimension_numbers<[1], [0], [0], [1], [0, 0, 1, 1], [], []>} : vector<16x128xbf16>, vector<128x128xbf16>, vector<16x128xf32> -> vector<16x128xf32>
    %c12 = arith.constant 12 : index
    %c0_53 = arith.constant 0 : index
    %140 = vector.load %arg4[%c12, %c0_53] : memref<16x128xf32, #tpu.memory_space<vmem>>, vector<1x128xf32>
    %141 = vector.broadcast %140 : vector<1x128xf32> to vector<16x128xf32>
    %142 = arith.addf %139, %141 : vector<16x128xf32>
    %c16 = arith.constant 16 : index
    %c0_54 = arith.constant 0 : index
    %143 = vector.load %arg6[%c16, %c0_54] : memref<32x128xf32, #tpu.memory_space<vmem>>, vector<16x128xf32>
    tpu.vector_store %arg6[%c16, %c0_54], %142 {strides = array<i32>} : memref<32x128xf32, #tpu.memory_space<vmem>>, vector<16x128xf32>,
    %cst_55 = arith.constant 0.000000e+00 : f32
    %144 = vector.broadcast %cst_55 : f32 to vector<4x1xf32>
    %145 = tpu.concatenate %64, %112, %144 in 0 : vector<32x1xf32>, vector<4x1xf32>, vector<4x1xf32> -> vector<40x1xf32>
    %c0_56 = arith.constant 0 : index
    %c0_57 = arith.constant 0 : index
    %146 = vector.load %arg7[%c0_56, %c0_57] : memref<40x1xf32, #tpu.memory_space<vmem>>, vector<40x1xf32>
    tpu.vector_store %arg7[%c0_56, %c0_57], %145 {strides = array<i32>} : memref<40x1xf32, #tpu.memory_space<vmem>>, vector<40x1xf32>,
    return
  }
}

</mosaic_0001>

<llo_original>
// kernel: cycle_gan_forward.1
$region0: #{cycle_gan_forward.1}
  #allocation0 [shape = 'u32[]', space=smem, size = 0x4, offset = 0x4, fixed_abs, tag = 'smem constant byte address 0x4 - core index']
  #allocation1 [shape = 'u32[144,128]{1,0:T(1,128)}', space=vmem, size = 0x12000, scoped, tag = 'internal scratch']
  #allocation2 [shape = 'f32[1,1]{1,0:T(1,128)S(1)}', space=vmem, size = 0x200, scoped, tag = 'scoped memory for cycle_gan_forward.1']
  %s0 = inlined_call_operand.vmem [shape: s32[32,1], index: 0, kind: input, shape index: {}]
  %s1 = inlined_call_operand.vmem [shape: f32[16,128], index: 1, kind: input, shape index: {}]
  %s2 = inlined_call_operand.vmem [shape: f32[6,128,128], index: 2, kind: input, shape index: {}]
  %s3 = inlined_call_operand.vmem [shape: f32[128,256], index: 3, kind: input, shape index: {}]
  %s4 = inlined_call_operand.vmem [shape: f32[16,128], index: 4, kind: input, shape index: {}]
  %s5 = inlined_call_operand.<no memory space> [shape: f32[1,1], index: 5, kind: input, shape index: {}]
  %s6 = inlined_call_operand.vmem [shape: f32[32,128], index: 6, kind: output, shape index: {0}]
  %s7 = inlined_call_operand.vmem [shape: f32[40,1], index: 7, kind: output, shape index: {1}]
  %8 = xla_tuple %s6, %s7
  %s9 = sld [smem:[#allocation0]]
  $region42: #{cycle_gan_forward.1} parent=0
    _
  %s11 = ssub.s32 1, %s9
  %s12 = scalar_select 0, %s11, %s9
  %v13 = vstv %s5
  %14 = vst [vmem:[#allocation2] sm:$0x1] %v13
  // Predicated region
  $region2: #{cycle_gan_forward.1} parent=0 // pred_check
    _
  $region3: #{cycle_gan_forward.1} parent=0 // pred_check_branch
    %16 = sbr.rel (0) target = $region5
  $region4: #{cycle_gan_forward.1} parent=0 // pred_region
    _
  $region5: #{cycle_gan_forward.1} parent=0 // pred_fallthru
    _
  // Predicated region
  $region6: #{cycle_gan_forward.1} parent=0 // pred_check
    _
  $region7: #{cycle_gan_forward.1} parent=0 // pred_check_branch
    %18 = sbr.rel (0) target = $region9
  $region8: #{cycle_gan_forward.1} parent=0 // pred_region
    _
  $region9: #{cycle_gan_forward.1} parent=0 // pred_fallthru
    _
  // Predicated region
  $region10: #{cycle_gan_forward.1} parent=0 // pred_check
    _
  $region11: #{cycle_gan_forward.1} parent=0 // pred_check_branch
    %20 = sbr.rel (0) target = $region13
  $region12: #{cycle_gan_forward.1} parent=0 // pred_region
    _
  $region13: #{cycle_gan_forward.1} parent=0 // pred_fallthru
    _
  // Predicated region
  $region14: #{cycle_gan_forward.1} parent=0 // pred_check
    _
  $region15: #{cycle_gan_forward.1} parent=0 // pred_check_branch
    %22 = sbr.rel (0) target = $region17
  $region16: #{cycle_gan_forward.1} parent=0 // pred_region
    _
  $region17: #{cycle_gan_forward.1} parent=0 // pred_fallthru
    _
  // Predicated region
  $region18: #{cycle_gan_forward.1} parent=0 // pred_check
    _
  $region19: #{cycle_gan_forward.1} parent=0 // pred_check_branch
    %24 = sbr.rel (0) target = $region21
  $region20: #{cycle_gan_forward.1} parent=0 // pred_region
    _
  $region21: #{cycle_gan_forward.1} parent=0 // pred_fallthru
    _
  // Predicated region
  $region22: #{cycle_gan_forward.1} parent=0 // pred_check
    _
  $region23: #{cycle_gan_forward.1} parent=0 // pred_check_branch
    %26 = sbr.rel (0) target = $region25
  $region24: #{cycle_gan_forward.1} parent=0 // pred_region
    _
  $region25: #{cycle_gan_forward.1} parent=0 // pred_fallthru
    _
  %v28 = vlaneseq
  %v29 = vand.u32 %v28, 127
  %v30 = vcvt.s32.f32 %v29
  %v31 = vld [vmem:[%s0] sm:$0xff]
  %v32 = vld [vmem:[%s0 + $0x8] sm:$0xff]
  %v33 = vld [vmem:[%s0 + $0x10] sm:$0xff]
  %v34 = vld [vmem:[%s0 + $0x18] sm:$0xff]
  %35 = vset.pattern.permute.xlu0 0
  %36 = vperm.xlu0 %35, %v31
  %v37 = vpop.permute.xlu0 %36
  %38 = vset.pattern.permute.xlu0 0
  %39 = vperm.xlu0 %38, %v32
  %v40 = vpop.permute.xlu0 %39
  %41 = vset.pattern.permute.xlu0 0
  %42 = vperm.xlu0 %41, %v33
  %v43 = vpop.permute.xlu0 %42
  %44 = vset.pattern.permute.xlu0 0
  %45 = vperm.xlu0 %44, %v34
  %v46 = vpop.permute.xlu0 %45
  %vm47 = vcmp.eq.s32.totalorder %v29, %v37
  %vm48 = vcmp.eq.s32.totalorder %v29, %v40
  %vm49 = vcmp.eq.s32.totalorder %v29, %v43
  %vm50 = vcmp.eq.s32.totalorder %v29, %v46
  %v51 = vsel %vm47, 1.0, 0.0
  %v52 = vsel %vm48, 1.0, 0.0
  %v53 = vsel %vm49, 1.0, 0.0
  %v54 = vsel %vm50, 1.0, 0.0
  %v55 = vrot.slane %v51, 4
  %v56 = vadd.f32 %v51, %v55
  %v57 = vrot.slane %v56, 2
  %v58 = vadd.f32 %v56, %v57
  %v59 = vrot.slane %v58, 1
  %v60 = vadd.f32 %v58, %v59
  %v61 = vrot.slane %v52, 4
  %v62 = vadd.f32 %v52, %v61
  %v63 = vrot.slane %v62, 2
  %v64 = vadd.f32 %v62, %v63
  %v65 = vrot.slane %v64, 1
  %v66 = vadd.f32 %v64, %v65
  %vm67 = vcmask 1040384
  %v68 = vsel %vm67, %v60, %v66
  %v69 = vmul.f32 %v68, 0.125
  %v70 = vld [vmem:[%s2] sm:$0xff]
  %v71 = vld [vmem:[%s2 + $0x8] sm:$0xff]
  %v72 = vld [vmem:[%s2 + $0x10] sm:$0xff]
  %v73 = vld [vmem:[%s2 + $0x18] sm:$0xff]
  %v74 = vld [vmem:[%s2 + $0x20] sm:$0xff]
  %v75 = vld [vmem:[%s2 + $0x28] sm:$0xff]
  %v76 = vld [vmem:[%s2 + $0x30] sm:$0xff]
  %v77 = vld [vmem:[%s2 + $0x38] sm:$0xff]
  %v78 = vld [vmem:[%s2 + $0x40] sm:$0xff]
  %v79 = vld [vmem:[%s2 + $0x48] sm:$0xff]
  %v80 = vld [vmem:[%s2 + $0x50] sm:$0xff]
  %v81 = vld [vmem:[%s2 + $0x58] sm:$0xff]
  %v82 = vld [vmem:[%s2 + $0x60] sm:$0xff]
  %v83 = vld [vmem:[%s2 + $0x68] sm:$0xff]
  %v84 = vld [vmem:[%s2 + $0x70] sm:$0xff]
  %v85 = vld [vmem:[%s2 + $0x78] sm:$0xff]
  %v86 = vpack.c.bf16 %v69, %v69
  %v87 = vpack.c.bf16 %v71, %v70
  %v88 = vpack.c.bf16 %v73, %v72
  %v89 = vpack.c.bf16 %v75, %v74
  %v90 = vpack.c.bf16 %v77, %v76
  %v91 = vpack.c.bf16 %v79, %v78
  %v92 = vpack.c.bf16 %v81, %v80
  %v93 = vpack.c.bf16 %v83, %v82
  %v94 = vpack.c.bf16 %v85, %v84
  %95 = vmatprep.subr.bf16.mxu0 0
  %96 = vmatpush1.bf16.msra.mxu0 %v94
  %97 = vmatprep.subr.bf16.mxu0 0
  %98 = vmatpush1.bf16.msra.mxu0 %v93
  %99 = vmatprep.subr.bf16.mxu0 0
  %100 = vmatpush1.bf16.msra.mxu0 %v92
  %101 = vmatprep.subr.bf16.mxu0 0
  %102 = vmatpush1.bf16.msra.mxu0 %v91
  %103 = vmatprep.subr.bf16.mxu0 0
  %104 = vmatpush1.bf16.msra.mxu0 %v90
  %105 = vmatprep.subr.bf16.mxu0 0
  %106 = vmatpush1.bf16.msra.mxu0 %v89
  %107 = vmatprep.subr.bf16.mxu0 0
  %108 = vmatpush1.bf16.msra.mxu0 %v88
  %109 = vmatprep.subr.bf16.mxu0 0
  %110 = vmatpush1.bf16.msra.mxu0 %v87
  %111 = vmatprep.subr.bf16.mxu0 0
  %112 = vmatpush2.bf16.msra.mxu0 0
  %113 = vmatprep.subr.bf16.mxu0 0
  %114 = vmatpush2.bf16.msra.mxu0 0
  %115 = vmatprep.subr.bf16.mxu0 0
  %116 = vmatpush2.bf16.msra.mxu0 0
  %117 = vmatprep.subr.bf16.mxu0 0
  %118 = vmatpush2.bf16.msra.mxu0 0
  %119 = vmatprep.subr.bf16.mxu0 0
  %120 = vmatpush2.bf16.msra.mxu0 0
  %121 = vmatprep.subr.bf16.mxu0 0
  %122 = vmatpush2.bf16.msra.mxu0 0
  %123 = vmatprep.subr.bf16.mxu0 0
  %124 = vmatpush2.bf16.msra.mxu0 0
  %125 = vmatprep.subr.bf16.mxu0 0
  %126 = vmatpush2.bf16.msra.mxu0 0
  %127 = vmatprep.mubr.bf16.mxu0 0
  %128 = vmatmul.mubr.bf16.gmra.mxu0 %v86
  %v129 = vpop.f32.mrf.mxu0
  %v130 = vadd.f32 0.0, %v129
  %v131 = vpop.f32.mrf.mxu0
  %v132 = vpop.f32.mrf.mxu0
  %v133 = vpop.f32.mrf.mxu0
  %134 = vdwg.mxu0
  %v135 = vld [vmem:[%s4] sm:$0xff]
  %v136 = vlaneseq
  %v137 = vshrl.u32 %v136, 7
  %v138 = vsub.s32 0, %v137
  %v139 = vrot.slane %v130, %v138
  %v140 = vlaneseq
  %v141 = vshrl.u32 %v140, 7
  %v142 = vsub.s32 1, %v141
  %v143 = vrot.slane %v130, %v142
  %v144 = vadd.f32 %v139, %v135
  %v145 = vadd.f32 %v143, %v135
  %s146 = scalar_lea.vmem %s2, 128
  %v147 = vld [vmem:[%s146] sm:$0xff]
  %v148 = vld [vmem:[%s146 + $0x8] sm:$0xff]
  %v149 = vld [vmem:[%s146 + $0x10] sm:$0xff]
  %v150 = vld [vmem:[%s146 + $0x18] sm:$0xff]
  %v151 = vld [vmem:[%s146 + $0x20] sm:$0xff]
  %v152 = vld [vmem:[%s146 + $0x28] sm:$0xff]
  %v153 = vld [vmem:[%s146 + $0x30] sm:$0xff]
  %v154 = vld [vmem:[%s146 + $0x38] sm:$0xff]
  %v155 = vld [vmem:[%s146 + $0x40] sm:$0xff]
  %v156 = vld [vmem:[%s146 + $0x48] sm:$0xff]
  %v157 = vld [vmem:[%s146 + $0x50] sm:$0xff]
  %v158 = vld [vmem:[%s146 + $0x58] sm:$0xff]
  %v159 = vld [vmem:[%s146 + $0x60] sm:$0xff]
  %v160 = vld [vmem:[%s146 + $0x68] sm:$0xff]
  %v161 = vld [vmem:[%s146 + $0x70] sm:$0xff]
  %v162 = vld [vmem:[%s146 + $0x78] sm:$0xff]
  %v163 = vpack.c.bf16 %v145, %v144
  %v164 = vpack.c.bf16 %v148, %v147
  %v165 = vpack.c.bf16 %v150, %v149
  %v166 = vpack.c.bf16 %v152, %v151
  %v167 = vpack.c.bf16 %v154, %v153
  %v168 = vpack.c.bf16 %v156, %v155
  %v169 = vpack.c.bf16 %v158, %v157
  %v170 = vpack.c.bf16 %v160, %v159
  %v171 = vpack.c.bf16 %v162, %v161
  %v172 = vld [vmem:[%s4 + $0x8] sm:$0x1]
  %v173 = vlaneseq
  %v174 = vshrl.u32 %v173, 7
  %v175 = vsub.s32 0, %v174
  %v176 = vrot.slane %v172, %v175
  %177 = vmatprep.subr.bf16.mxu0 0
  %178 = vmatpush1.bf16.msra.mxu0 %v171
  %179 = vmatprep.subr.bf16.mxu0 0
  %180 = vmatpush1.bf16.msra.mxu0 %v170
  %181 = vmatprep.subr.bf16.mxu0 0
  %182 = vmatpush1.bf16.msra.mxu0 %v169
  %183 = vmatprep.subr.bf16.mxu0 0
  %184 = vmatpush1.bf16.msra.mxu0 %v168
  %185 = vmatprep.subr.bf16.mxu0 0
  %186 = vmatpush1.bf16.msra.mxu0 %v167
  %187 = vmatprep.subr.bf16.mxu0 0
  %188 = vmatpush1.bf16.msra.mxu0 %v166
  %189 = vmatprep.subr.bf16.mxu0 0
  %190 = vmatpush1.bf16.msra.mxu0 %v165
  %191 = vmatprep.subr.bf16.mxu0 0
  %192 = vmatpush1.bf16.msra.mxu0 %v164
  %193 = vmatprep.subr.bf16.mxu0 0
  %194 = vmatpush2.bf16.msra.mxu0 0
  %195 = vmatprep.subr.bf16.mxu0 0
  %196 = vmatpush2.bf16.msra.mxu0 0
  %197 = vmatprep.subr.bf16.mxu0 0
  %198 = vmatpush2.bf16.msra.mxu0 0
  %199 = vmatprep.subr.bf16.mxu0 0
  %200 = vmatpush2.bf16.msra.mxu0 0
  %201 = vmatprep.subr.bf16.mxu0 0
  %202 = vmatpush2.bf16.msra.mxu0 0
  %203 = vmatprep.subr.bf16.mxu0 0
  %204 = vmatpush2.bf16.msra.mxu0 0
  %205 = vmatprep.subr.bf16.mxu0 0
  %206 = vmatpush2.bf16.msra.mxu0 0
  %207 = vmatprep.subr.bf16.mxu0 0
  %208 = vmatpush2.bf16.msra.mxu0 0
  %209 = vmatprep.mubr.bf16.mxu0 0
  %210 = vmatmul.mubr.bf16.gmra.mxu0 %v163
  %v211 = vpop.f32.mrf.mxu0
  %v212 = vadd.f32 %v176, %v211
  %v213 = vpop.f32.mrf.mxu0
  %v214 = vpop.f32.mrf.mxu0
  %v215 = vadd.f32 %v176, %v214
  %v216 = vpop.f32.mrf.mxu0
  %217 = vdwg.mxu0
  %v218 = vtanh.pop %v212
  %v219 = vtanh.pop %v215
  %s220 = scalar_lea.vmem %s2, 256
  %v221 = vld [vmem:[%s220] sm:$0xff]
  %v222 = vld [vmem:[%s220 + $0x8] sm:$0xff]
  %v223 = vld [vmem:[%s220 + $0x10] sm:$0xff]
  %v224 = vld [vmem:[%s220 + $0x18] sm:$0xff]
  %v225 = vld [vmem:[%s220 + $0x20] sm:$0xff]
  %v226 = vld [vmem:[%s220 + $0x28] sm:$0xff]
  %v227 = vld [vmem:[%s220 + $0x30] sm:$0xff]
  %v228 = vld [vmem:[%s220 + $0x38] sm:$0xff]
  %v229 = vld [vmem:[%s220 + $0x40] sm:$0xff]
  %v230 = vld [vmem:[%s220 + $0x48] sm:$0xff]
  %v231 = vld [vmem:[%s220 + $0x50] sm:$0xff]
  %v232 = vld [vmem:[%s220 + $0x58] sm:$0xff]
  %v233 = vld [vmem:[%s220 + $0x60] sm:$0xff]
  %v234 = vld [vmem:[%s220 + $0x68] sm:$0xff]
  %v235 = vld [vmem:[%s220 + $0x70] sm:$0xff]
  %v236 = vld [vmem:[%s220 + $0x78] sm:$0xff]
  %v237 = vpack.c.bf16 %v219, %v218
  %v238 = vpack.c.bf16 %v222, %v221
  %v239 = vpack.c.bf16 %v224, %v223
  %v240 = vpack.c.bf16 %v226, %v225
  %v241 = vpack.c.bf16 %v228, %v227
  %v242 = vpack.c.bf16 %v230, %v229
  %v243 = vpack.c.bf16 %v232, %v231
  %v244 = vpack.c.bf16 %v234, %v233
  %v245 = vpack.c.bf16 %v236, %v235
  %v246 = vld [vmem:[%s4 + $0x9] sm:$0x1]
  %v247 = vlaneseq
  %v248 = vshrl.u32 %v247, 7
  %v249 = vsub.s32 0, %v248
  %v250 = vrot.slane %v246, %v249
  %251 = vmatprep.subr.bf16.mxu0 0
  %252 = vmatpush1.bf16.msra.mxu0 %v245
  %253 = vmatprep.subr.bf16.mxu0 0
  %254 = vmatpush1.bf16.msra.mxu0 %v244
  %255 = vmatprep.subr.bf16.mxu0 0
  %256 = vmatpush1.bf16.msra.mxu0 %v243
  %257 = vmatprep.subr.bf16.mxu0 0
  %258 = vmatpush1.bf16.msra.mxu0 %v242
  %259 = vmatprep.subr.bf16.mxu0 0
  %260 = vmatpush1.bf16.msra.mxu0 %v241
  %261 = vmatprep.subr.bf16.mxu0 0
  %262 = vmatpush1.bf16.msra.mxu0 %v240
  %263 = vmatprep.subr.bf16.mxu0 0
  %264 = vmatpush1.bf16.msra.mxu0 %v239
  %265 = vmatprep.subr.bf16.mxu0 0
  %266 = vmatpush1.bf16.msra.mxu0 %v238
  %267 = vmatprep.subr.bf16.mxu0 0
  %268 = vmatpush2.bf16.msra.mxu0 0
  %269 = vmatprep.subr.bf16.mxu0 0
  %270 = vmatpush2.bf16.msra.mxu0 0
  %271 = vmatprep.subr.bf16.mxu0 0
  %272 = vmatpush2.bf16.msra.mxu0 0
  %273 = vmatprep.subr.bf16.mxu0 0
  %274 = vmatpush2.bf16.msra.mxu0 0
  %275 = vmatprep.subr.bf16.mxu0 0
  %276 = vmatpush2.bf16.msra.mxu0 0
  %277 = vmatprep.subr.bf16.mxu0 0
  %278 = vmatpush2.bf16.msra.mxu0 0
  %279 = vmatprep.subr.bf16.mxu0 0
  %280 = vmatpush2.bf16.msra.mxu0 0
  %281 = vmatprep.subr.bf16.mxu0 0
  %282 = vmatpush2.bf16.msra.mxu0 0
  %283 = vmatprep.mubr.bf16.mxu0 0
  %284 = vmatmul.mubr.bf16.gmra.mxu0 %v237
  %v285 = vpop.f32.mrf.mxu0
  %v286 = vadd.f32 %v250, %v285
  %v287 = vpop.f32.mrf.mxu0
  %v288 = vpop.f32.mrf.mxu0
  %v289 = vadd.f32 %v250, %v288
  %v290 = vpop.f32.mrf.mxu0
  %291 = vdwg.mxu0
  %292 = vst [vmem:[%s6] sm:$0xff] %v286
  %293 = vst [vmem:[%s6 + $0x8] sm:$0xff] %v289
  %v294 = vld [vmem:[%s1] sm:$0xff]
  %v295 = vld [vmem:[%s1 + $0x8] sm:$0xff]
  %v296 = vadd.f32 %v286, %v294
  %v297 = vadd.f32 %v289, %v295
  %298 = vmax.xlane.f32.xlu0 %v286
  %v299 = vpop.xlane.xlu0 %298
  %300 = vmax.xlane.f32.xlu0 %v289
  %v301 = vpop.xlane.xlu0 %300
  %302 = vmax.xlane.f32.xlu0 %v296
  %v303 = vpop.xlane.xlu0 %302
  %304 = vmax.xlane.f32.xlu0 %v297
  %v305 = vpop.xlane.xlu0 %304
  %vm306 = vcmp.eq.f32.partialorder %v286, %v299
  %vm307 = vcmp.eq.f32.partialorder %v289, %v301
  %vm308 = vcmp.eq.f32.partialorder %v296, %v303
  %vm309 = vcmp.eq.f32.partialorder %v297, %v305
  %v310 = vsel %vm306, %v30, 128.0
  %v311 = vsel %vm307, %v30, 128.0
  %v312 = vsel %vm308, %v30, 128.0
  %v313 = vsel %vm309, %v30, 128.0
  %314 = vmin.xlane.f32.xlu0 %v310
  %v315 = vpop.xlane.xlu0 %314
  %316 = vmin.xlane.f32.xlu0 %v311
  %v317 = vpop.xlane.xlu0 %316
  %318 = vmin.xlane.f32.xlu0 %v312
  %v319 = vpop.xlane.xlu0 %318
  %320 = vmin.xlane.f32.xlu0 %v313
  %v321 = vpop.xlane.xlu0 %320
  %v322 = vlaneseq
  %v323 = vshrl.u32 %v322, 7
  %v324 = vadd.s32 %v323, 8
  %v325 = vadd.s32 %v323, 16
  %v326 = vadd.s32 %v323, 24
  %v327 = vand.u32 %v323, 7
  %v328 = vand.u32 %v324, 7
  %v329 = vand.u32 %v325, 7
  %v330 = vand.u32 %v326, 7
  %vm331 = vcmp.lt.s32.totalorder %v327, 7
  %vm332 = vcmp.lt.s32.totalorder %v328, 7
  %vm333 = vcmp.lt.s32.totalorder %v329, 7
  %vm334 = vcmp.lt.s32.totalorder %v330, 7
  %vm335 = vcmp.eq.f32.partialorder %v30, %v315
  %vm336 = vcmp.eq.f32.partialorder %v30, %v317
  %vm337 = vcmp.eq.f32.partialorder %v30, %v319
  %vm338 = vcmp.eq.f32.partialorder %v30, %v321
  %v339 = vsel %vm331, 1, 0
  %v340 = vsel %vm332, 1, 0
  %v341 = vsel %vm333, 1, 0
  %v342 = vsel %vm334, 1, 0
  %vm343 = vcmp.eq.s32.totalorder %v339, 1
  %vm344 = vcmp.eq.s32.totalorder %v340, 1
  %vm345 = vcmp.eq.s32.totalorder %v341, 1
  %vm346 = vcmp.eq.s32.totalorder %v342, 1
  %vm347 = vmand %vm335, %vm343
  %vm348 = vmand %vm336, %vm344
  %vm349 = vmand %vm337, %vm345
  %vm350 = vmand %vm338, %vm346
  %v351 = vsel %vm347, 1.0, 0.0
  %v352 = vsel %vm348, 1.0, 0.0
  %v353 = vsel %vm349, 1.0, 0.0
  %v354 = vsel %vm350, 1.0, 0.0
  %vm355 = vcmp.eq.s32.totalorder %v29, 0
  %v356 = vsel %vm355, 1.0, 0.0
  %v357 = vrot.slane %v351, 4
  %v358 = vadd.f32 %v351, %v357
  %v359 = vrot.slane %v358, 2
  %v360 = vadd.f32 %v358, %v359
  %v361 = vrot.slane %v360, 1
  %v362 = vadd.f32 %v360, %v361
  %v363 = vrot.slane %v352, 4
  %v364 = vadd.f32 %v352, %v363
  %v365 = vrot.slane %v364, 2
  %v366 = vadd.f32 %v364, %v365
  %v367 = vrot.slane %v366, 1
  %v368 = vadd.f32 %v366, %v367
  %v369 = vrot.slane %v353, 4
  %v370 = vadd.f32 %v353, %v369
  %v371 = vrot.slane %v370, 2
  %v372 = vadd.f32 %v370, %v371
  %v373 = vrot.slane %v372, 1
  %v374 = vadd.f32 %v372, %v373
  %v375 = vrot.slane %v354, 4
  %v376 = vadd.f32 %v354, %v375
  %v377 = vrot.slane %v376, 2
  %v378 = vadd.f32 %v376, %v377
  %v379 = vrot.slane %v378, 1
  %v380 = vadd.f32 %v378, %v379
  %v381 = vsel %vm67, %v362, %v368
  %vm382 = vcmask 1041408
  %v383 = vsel %vm382, %v381, %v374
  %vm384 = vcmask 1042432
  %v385 = vsel %vm384, %v383, %v380
  %v386 = vadd.f32 %v385, %v356
  %v387 = vmul.f32 %v386, 0.125
  %v388 = vld [vmem:[%s3] sm:$0xff]
  %v389 = vld [vmem:[%s3 + $0x8] sm:$0xff]
  %v390 = vld [vmem:[%s3 + $0x10] sm:$0xff]
  %v391 = vld [vmem:[%s3 + $0x18] sm:$0xff]
  %v392 = vld [vmem:[%s3 + $0x20] sm:$0xff]
  %v393 = vld [vmem:[%s3 + $0x28] sm:$0xff]
  %v394 = vld [vmem:[%s3 + $0x30] sm:$0xff]
  %v395 = vld [vmem:[%s3 + $0x38] sm:$0xff]
  %v396 = vld [vmem:[%s3 + $0x40] sm:$0xff]
  %v397 = vld [vmem:[%s3 + $0x48] sm:$0xff]
  %v398 = vld [vmem:[%s3 + $0x50] sm:$0xff]
  %v399 = vld [vmem:[%s3 + $0x58] sm:$0xff]
  %v400 = vld [vmem:[%s3 + $0x60] sm:$0xff]
  %v401 = vld [vmem:[%s3 + $0x68] sm:$0xff]
  %v402 = vld [vmem:[%s3 + $0x70] sm:$0xff]
  %v403 = vld [vmem:[%s3 + $0x78] sm:$0xff]
  %v404 = vld [vmem:[%s3 + $0x80] sm:$0xff]
  %v405 = vld [vmem:[%s3 + $0x88] sm:$0xff]
  %v406 = vld [vmem:[%s3 + $0x90] sm:$0xff]
  %v407 = vld [vmem:[%s3 + $0x98] sm:$0xff]
  %v408 = vld [vmem:[%s3 + $0xa0] sm:$0xff]
  %v409 = vld [vmem:[%s3 + $0xa8] sm:$0xff]
  %v410 = vld [vmem:[%s3 + $0xb0] sm:$0xff]
  %v411 = vld [vmem:[%s3 + $0xb8] sm:$0xff]
  %v412 = vld [vmem:[%s3 + $0xc0] sm:$0xff]
  %v413 = vld [vmem:[%s3 + $0xc8] sm:$0xff]
  %v414 = vld [vmem:[%s3 + $0xd0] sm:$0xff]
  %v415 = vld [vmem:[%s3 + $0xd8] sm:$0xff]
  %v416 = vld [vmem:[%s3 + $0xe0] sm:$0xff]
  %v417 = vld [vmem:[%s3 + $0xe8] sm:$0xff]
  %v418 = vld [vmem:[%s3 + $0xf0] sm:$0xff]
  %v419 = vld [vmem:[%s3 + $0xf8] sm:$0xff]
  %v420 = vpack.c.bf16 %v387, %v387
  %v421 = vpack.c.bf16 %v390, %v388
  %v422 = vpack.c.bf16 %v391, %v389
  %v423 = vpack.c.bf16 %v394, %v392
  %v424 = vpack.c.bf16 %v395, %v393
  %v425 = vpack.c.bf16 %v398, %v396
  %v426 = vpack.c.bf16 %v399, %v397
  %v427 = vpack.c.bf16 %v402, %v400
  %v428 = vpack.c.bf16 %v403, %v401
  %v429 = vpack.c.bf16 %v406, %v404
  %v430 = vpack.c.bf16 %v407, %v405
  %v431 = vpack.c.bf16 %v410, %v408
  %v432 = vpack.c.bf16 %v411, %v409
  %v433 = vpack.c.bf16 %v414, %v412
  %v434 = vpack.c.bf16 %v415, %v413
  %v435 = vpack.c.bf16 %v418, %v416
  %v436 = vpack.c.bf16 %v419, %v417
  %437 = vmatprep.subr.bf16.mxu0 %v436
  %438 = vmatpush1.bf16.msra.mxu0 %v435
  %439 = vmatprep.subr.bf16.mxu0 %v434
  %440 = vmatpush1.bf16.msra.mxu0 %v433
  %441 = vmatprep.subr.bf16.mxu0 %v432
  %442 = vmatpush1.bf16.msra.mxu0 %v431
  %443 = vmatprep.subr.bf16.mxu0 %v430
  %444 = vmatpush1.bf16.msra.mxu0 %v429
  %445 = vmatprep.subr.bf16.mxu0 %v428
  %446 = vmatpush1.bf16.msra.mxu0 %v427
  %447 = vmatprep.subr.bf16.mxu0 %v426
  %448 = vmatpush1.bf16.msra.mxu0 %v425
  %449 = vmatprep.subr.bf16.mxu0 %v424
  %450 = vmatpush1.bf16.msra.mxu0 %v423
  %451 = vmatprep.subr.bf16.mxu0 %v422
  %452 = vmatpush1.bf16.msra.mxu0 %v421
  %453 = vmatprep.subr.bf16.mxu0 0
  %454 = vmatpush2.bf16.msra.mxu0 0
  %455 = vmatprep.subr.bf16.mxu0 0
  %456 = vmatpush2.bf16.msra.mxu0 0
  %457 = vmatprep.subr.bf16.mxu0 0
  %458 = vmatpush2.bf16.msra.mxu0 0
  %459 = vmatprep.subr.bf16.mxu0 0
  %460 = vmatpush2.bf16.msra.mxu0 0
  %461 = vmatprep.subr.bf16.mxu0 0
  %462 = vmatpush2.bf16.msra.mxu0 0
  %463 = vmatprep.subr.bf16.mxu0 0
  %464 = vmatpush2.bf16.msra.mxu0 0
  %465 = vmatprep.subr.bf16.mxu0 0
  %466 = vmatpush2.bf16.msra.mxu0 0
  %467 = vmatprep.subr.bf16.mxu0 0
  %468 = vmatpush2.bf16.msra.mxu0 0
  %469 = vmatprep.mubr.bf16.mxu0 0
  %470 = vmatmul.mubr.bf16.gmra.mxu0 %v420
  %v471 = vpop.f32.mrf.mxu0
  %v472 = vadd.f32 0.0, %v471
  %v473 = vpop.f32.mrf.mxu0
  %v474 = vadd.f32 0.0, %v473
  %v475 = vpop.f32.mrf.mxu0
  %v476 = vpop.f32.mrf.mxu0
  %477 = vdwg.mxu0
  %v478 = vld [vmem:[%s4 + $0xa] sm:$0x1]
  %v479 = vlaneseq
  %v480 = vshrl.u32 %v479, 7
  %v481 = vsub.s32 0, %v480
  %v482 = vrot.slane %v478, %v481
  %v483 = vmul.f32 %v472, %v482
  %vm484 = vcmask 1043456
  %v485 = vsel %vm484, %v483, 0.0
  %486 = vadd.xlane.f32.xlu0 %v485
  %v487 = vpop.xlane.xlu0 %486
  %v488 = vld [vmem:[#allocation2] sm:$0x1]
  %v490 = vlaneseq
  %v491 = vshrl.u32 %v490, 7
  %v492 = vsub.s32 0, %v491
  %v493 = vrot.slane %v488, %v492
  %v495 = vadd.f32 %v487, %v493
  %s496 = scalar_lea.vmem %s2, 384
  %v497 = vld [vmem:[%s496] sm:$0xff]
  %v498 = vld [vmem:[%s496 + $0x8] sm:$0xff]
  %v499 = vld [vmem:[%s496 + $0x10] sm:$0xff]
  %v500 = vld [vmem:[%s496 + $0x18] sm:$0xff]
  %v501 = vld [vmem:[%s496 + $0x20] sm:$0xff]
  %v502 = vld [vmem:[%s496 + $0x28] sm:$0xff]
  %v503 = vld [vmem:[%s496 + $0x30] sm:$0xff]
  %v504 = vld [vmem:[%s496 + $0x38] sm:$0xff]
  %v505 = vld [vmem:[%s496 + $0x40] sm:$0xff]
  %v506 = vld [vmem:[%s496 + $0x48] sm:$0xff]
  %v507 = vld [vmem:[%s496 + $0x50] sm:$0xff]
  %v508 = vld [vmem:[%s496 + $0x58] sm:$0xff]
  %v509 = vld [vmem:[%s496 + $0x60] sm:$0xff]
  %v510 = vld [vmem:[%s496 + $0x68] sm:$0xff]
  %v511 = vld [vmem:[%s496 + $0x70] sm:$0xff]
  %v512 = vld [vmem:[%s496 + $0x78] sm:$0xff]
  %v513 = vpack.c.bf16 %v54, %v53
  %v514 = vpack.c.bf16 %v498, %v497
  %v515 = vpack.c.bf16 %v500, %v499
  %v516 = vpack.c.bf16 %v502, %v501
  %v517 = vpack.c.bf16 %v504, %v503
  %v518 = vpack.c.bf16 %v506, %v505
  %v519 = vpack.c.bf16 %v508, %v507
  %v520 = vpack.c.bf16 %v510, %v509
  %v521 = vpack.c.bf16 %v512, %v511
  %522 = vmatprep.subr.bf16.mxu0 0
  %523 = vmatpush1.bf16.msra.mxu0 %v521
  %524 = vmatprep.subr.bf16.mxu0 0
  %525 = vmatpush1.bf16.msra.mxu0 %v520
  %526 = vmatprep.subr.bf16.mxu0 0
  %527 = vmatpush1.bf16.msra.mxu0 %v519
  %528 = vmatprep.subr.bf16.mxu0 0
  %529 = vmatpush1.bf16.msra.mxu0 %v518
  %530 = vmatprep.subr.bf16.mxu0 0
  %531 = vmatpush1.bf16.msra.mxu0 %v517
  %532 = vmatprep.subr.bf16.mxu0 0
  %533 = vmatpush1.bf16.msra.mxu0 %v516
  %534 = vmatprep.subr.bf16.mxu0 0
  %535 = vmatpush1.bf16.msra.mxu0 %v515
  %536 = vmatprep.subr.bf16.mxu0 0
  %537 = vmatpush1.bf16.msra.mxu0 %v514
  %538 = vmatprep.subr.bf16.mxu0 0
  %539 = vmatpush2.bf16.msra.mxu0 0
  %540 = vmatprep.subr.bf16.mxu0 0
  %541 = vmatpush2.bf16.msra.mxu0 0
  %542 = vmatprep.subr.bf16.mxu0 0
  %543 = vmatpush2.bf16.msra.mxu0 0
  %544 = vmatprep.subr.bf16.mxu0 0
  %545 = vmatpush2.bf16.msra.mxu0 0
  %546 = vmatprep.subr.bf16.mxu0 0
  %547 = vmatpush2.bf16.msra.mxu0 0
  %548 = vmatprep.subr.bf16.mxu0 0
  %549 = vmatpush2.bf16.msra.mxu0 0
  %550 = vmatprep.subr.bf16.mxu0 0
  %551 = vmatpush2.bf16.msra.mxu0 0
  %552 = vmatprep.subr.bf16.mxu0 0
  %553 = vmatpush2.bf16.msra.mxu0 0
  %554 = vmatprep.mubr.bf16.mxu0 0
  %555 = vmatmul.mubr.bf16.gmra.mxu0 %v513
  %v556 = vpop.f32.mrf.mxu0
  %v557 = vadd.f32 0.0, %v556
  %v558 = vpop.f32.mrf.mxu0
  %v559 = vpop.f32.mrf.mxu0
  %v560 = vadd.f32 0.0, %v559
  %v561 = vpop.f32.mrf.mxu0
  %562 = vdwg.mxu0
  %v563 = vlaneseq
  %v564 = vshrl.u32 %v563, 7
  %v565 = vsub.s32 2, %v564
  %v566 = vrot.slane %v474, %v565
  %v567 = vlaneseq
  %v568 = vshrl.u32 %v567, 7
  %v569 = vsub.s32 3, %v568
  %v570 = vrot.slane %v474, %v569
  %v571 = vadd.f32 %v566, %v557
  %v572 = vadd.f32 %v570, %v560
  %s573 = scalar_lea.vmem %s2, 512
  %v574 = vld [vmem:[%s573] sm:$0xff]
  %v575 = vld [vmem:[%s573 + $0x8] sm:$0xff]
  %v576 = vld [vmem:[%s573 + $0x10] sm:$0xff]
  %v577 = vld [vmem:[%s573 + $0x18] sm:$0xff]
  %v578 = vld [vmem:[%s573 + $0x20] sm:$0xff]
  %v579 = vld [vmem:[%s573 + $0x28] sm:$0xff]
  %v580 = vld [vmem:[%s573 + $0x30] sm:$0xff]
  %v581 = vld [vmem:[%s573 + $0x38] sm:$0xff]
  %v582 = vld [vmem:[%s573 + $0x40] sm:$0xff]
  %v583 = vld [vmem:[%s573 + $0x48] sm:$0xff]
  %v584 = vld [vmem:[%s573 + $0x50] sm:$0xff]
  %v585 = vld [vmem:[%s573 + $0x58] sm:$0xff]
  %v586 = vld [vmem:[%s573 + $0x60] sm:$0xff]
  %v587 = vld [vmem:[%s573 + $0x68] sm:$0xff]
  %v588 = vld [vmem:[%s573 + $0x70] sm:$0xff]
  %v589 = vld [vmem:[%s573 + $0x78] sm:$0xff]
  %v590 = vpack.c.bf16 %v572, %v571
  %v591 = vpack.c.bf16 %v575, %v574
  %v592 = vpack.c.bf16 %v577, %v576
  %v593 = vpack.c.bf16 %v579, %v578
  %v594 = vpack.c.bf16 %v581, %v580
  %v595 = vpack.c.bf16 %v583, %v582
  %v596 = vpack.c.bf16 %v585, %v584
  %v597 = vpack.c.bf16 %v587, %v586
  %v598 = vpack.c.bf16 %v589, %v588
  %v599 = vld [vmem:[%s4 + $0xb] sm:$0x1]
  %v600 = vlaneseq
  %v601 = vshrl.u32 %v600, 7
  %v602 = vsub.s32 0, %v601
  %v603 = vrot.slane %v599, %v602
  %604 = vmatprep.subr.bf16.mxu0 0
  %605 = vmatpush1.bf16.msra.mxu0 %v598
  %606 = vmatprep.subr.bf16.mxu0 0
  %607 = vmatpush1.bf16.msra.mxu0 %v597
  %608 = vmatprep.subr.bf16.mxu0 0
  %609 = vmatpush1.bf16.msra.mxu0 %v596
  %610 = vmatprep.subr.bf16.mxu0 0
  %611 = vmatpush1.bf16.msra.mxu0 %v595
  %612 = vmatprep.subr.bf16.mxu0 0
  %613 = vmatpush1.bf16.msra.mxu0 %v594
  %614 = vmatprep.subr.bf16.mxu0 0
  %615 = vmatpush1.bf16.msra.mxu0 %v593
  %616 = vmatprep.subr.bf16.mxu0 0
  %617 = vmatpush1.bf16.msra.mxu0 %v592
  %618 = vmatprep.subr.bf16.mxu0 0
  %619 = vmatpush1.bf16.msra.mxu0 %v591
  %620 = vmatprep.subr.bf16.mxu0 0
  %621 = vmatpush2.bf16.msra.mxu0 0
  %622 = vmatprep.subr.bf16.mxu0 0
  %623 = vmatpush2.bf16.msra.mxu0 0
  %624 = vmatprep.subr.bf16.mxu0 0
  %625 = vmatpush2.bf16.msra.mxu0 0
  %626 = vmatprep.subr.bf16.mxu0 0
  %627 = vmatpush2.bf16.msra.mxu0 0
  %628 = vmatprep.subr.bf16.mxu0 0
  %629 = vmatpush2.bf16.msra.mxu0 0
  %630 = vmatprep.subr.bf16.mxu0 0
  %631 = vmatpush2.bf16.msra.mxu0 0
  %632 = vmatprep.subr.bf16.mxu0 0
  %633 = vmatpush2.bf16.msra.mxu0 0
  %634 = vmatprep.subr.bf16.mxu0 0
  %635 = vmatpush2.bf16.msra.mxu0 0
  %636 = vmatprep.mubr.bf16.mxu0 0
  %637 = vmatmul.mubr.bf16.gmra.mxu0 %v590
  %v638 = vpop.f32.mrf.mxu0
  %v639 = vadd.f32 %v603, %v638
  %v640 = vpop.f32.mrf.mxu0
  %v641 = vpop.f32.mrf.mxu0
  %v642 = vadd.f32 %v603, %v641
  %v643 = vpop.f32.mrf.mxu0
  %644 = vdwg.mxu0
  %v645 = vtanh.pop %v639
  %v646 = vtanh.pop %v642
  %s647 = scalar_lea.vmem %s2, 640
  %v648 = vld [vmem:[%s647] sm:$0xff]
  %v649 = vld [vmem:[%s647 + $0x8] sm:$0xff]
  %v650 = vld [vmem:[%s647 + $0x10] sm:$0xff]
  %v651 = vld [vmem:[%s647 + $0x18] sm:$0xff]
  %v652 = vld [vmem:[%s647 + $0x20] sm:$0xff]
  %v653 = vld [vmem:[%s647 + $0x28] sm:$0xff]
  %v654 = vld [vmem:[%s647 + $0x30] sm:$0xff]
  %v655 = vld [vmem:[%s647 + $0x38] sm:$0xff]
  %v656 = vld [vmem:[%s647 + $0x40] sm:$0xff]
  %v657 = vld [vmem:[%s647 + $0x48] sm:$0xff]
  %v658 = vld [vmem:[%s647 + $0x50] sm:$0xff]
  %v659 = vld [vmem:[%s647 + $0x58] sm:$0xff]
  %v660 = vld [vmem:[%s647 + $0x60] sm:$0xff]
  %v661 = vld [vmem:[%s647 + $0x68] sm:$0xff]
  %v662 = vld [vmem:[%s647 + $0x70] sm:$0xff]
  %v663 = vld [vmem:[%s647 + $0x78] sm:$0xff]
  %v664 = vpack.c.bf16 %v646, %v645
  %v665 = vpack.c.bf16 %v649, %v648
  %v666 = vpack.c.bf16 %v651, %v650
  %v667 = vpack.c.bf16 %v653, %v652
  %v668 = vpack.c.bf16 %v655, %v654
  %v669 = vpack.c.bf16 %v657, %v656
  %v670 = vpack.c.bf16 %v659, %v658
  %v671 = vpack.c.bf16 %v661, %v660
  %v672 = vpack.c.bf16 %v663, %v662
  %v673 = vld [vmem:[%s4 + $0xc] sm:$0x1]
  %v674 = vlaneseq
  %v675 = vshrl.u32 %v674, 7
  %v676 = vsub.s32 0, %v675
  %v677 = vrot.slane %v673, %v676
  %678 = vmatprep.subr.bf16.mxu0 0
  %679 = vmatpush1.bf16.msra.mxu0 %v672
  %680 = vmatprep.subr.bf16.mxu0 0
  %681 = vmatpush1.bf16.msra.mxu0 %v671
  %682 = vmatprep.subr.bf16.mxu0 0
  %683 = vmatpush1.bf16.msra.mxu0 %v670
  %684 = vmatprep.subr.bf16.mxu0 0
  %685 = vmatpush1.bf16.msra.mxu0 %v669
  %686 = vmatprep.subr.bf16.mxu0 0
  %687 = vmatpush1.bf16.msra.mxu0 %v668
  %688 = vmatprep.subr.bf16.mxu0 0
  %689 = vmatpush1.bf16.msra.mxu0 %v667
  %690 = vmatprep.subr.bf16.mxu0 0
  %691 = vmatpush1.bf16.msra.mxu0 %v666
  %692 = vmatprep.subr.bf16.mxu0 0
  %693 = vmatpush1.bf16.msra.mxu0 %v665
  %694 = vmatprep.subr.bf16.mxu0 0
  %695 = vmatpush2.bf16.msra.mxu0 0
  %696 = vmatprep.subr.bf16.mxu0 0
  %697 = vmatpush2.bf16.msra.mxu0 0
  %698 = vmatprep.subr.bf16.mxu0 0
  %699 = vmatpush2.bf16.msra.mxu0 0
  %700 = vmatprep.subr.bf16.mxu0 0
  %701 = vmatpush2.bf16.msra.mxu0 0
  %702 = vmatprep.subr.bf16.mxu0 0
  %703 = vmatpush2.bf16.msra.mxu0 0
  %704 = vmatprep.subr.bf16.mxu0 0
  %705 = vmatpush2.bf16.msra.mxu0 0
  %706 = vmatprep.subr.bf16.mxu0 0
  %707 = vmatpush2.bf16.msra.mxu0 0
  %708 = vmatprep.subr.bf16.mxu0 0
  %709 = vmatpush2.bf16.msra.mxu0 0
  %710 = vmatprep.mubr.bf16.mxu0 0
  %711 = vmatmul.mubr.bf16.gmra.mxu0 %v664
  %v712 = vpop.f32.mrf.mxu0
  %v713 = vadd.f32 %v677, %v712
  %v714 = vpop.f32.mrf.mxu0
  %v715 = vpop.f32.mrf.mxu0
  %v716 = vadd.f32 %v677, %v715
  %v717 = vpop.f32.mrf.mxu0
  %718 = vdwg.mxu0
  %719 = vst [vmem:[%s6 + $0x10] sm:$0xff] %v713
  %720 = vst [vmem:[%s6 + $0x18] sm:$0xff] %v716
  %v721 = vsel %vm484, %v495, 0.0
  %vm722 = vcmask 7168
  %723 = vst.msk [vmem:[%s7] sm:$0xff] %vm722, %v315
  %724 = vst.msk [vmem:[%s7 + $0x8] sm:$0xff] %vm722, %v317
  %725 = vst.msk [vmem:[%s7 + $0x10] sm:$0xff] %vm722, %v319
  %726 = vst.msk [vmem:[%s7 + $0x18] sm:$0xff] %vm722, %v321
  %727 = vst.msk [vmem:[%s7 + $0x20] sm:$0xff] %vm722, %v721
  // Predicated region
  $region26: #{cycle_gan_forward.1} parent=0 // pred_check
    _
  $region27: #{cycle_gan_forward.1} parent=0 // pred_check_branch
    %729 = sbr.rel (0) target = $region29
  $region28: #{cycle_gan_forward.1} parent=0 // pred_region
    _
  $region29: #{cycle_gan_forward.1} parent=0 // pred_fallthru
    _
  // Predicated region
  $region30: #{cycle_gan_forward.1} parent=0 // pred_check
    _
  $region31: #{cycle_gan_forward.1} parent=0 // pred_check_branch
    %731 = sbr.rel (0) target = $region33
  $region32: #{cycle_gan_forward.1} parent=0 // pred_region
    _
  $region33: #{cycle_gan_forward.1} parent=0 // pred_fallthru
    _
  // Predicated region
  $region34: #{cycle_gan_forward.1} parent=0 // pred_check
    _
  $region35: #{cycle_gan_forward.1} parent=0 // pred_check_branch
    %733 = sbr.rel (0) target = $region37
  $region36: #{cycle_gan_forward.1} parent=0 // pred_region
    _
  $region37: #{cycle_gan_forward.1} parent=0 // pred_fallthru
    _
  // Predicated region
  $region38: #{cycle_gan_forward.1} parent=0 // pred_check
    _
  $region39: #{cycle_gan_forward.1} parent=0 // pred_check_branch
    %735 = sbr.rel (0) target = $region41
  $region40: #{cycle_gan_forward.1} parent=0 // pred_region
    _
  $region41: #{cycle_gan_forward.1} parent=0 // pred_fallthru
    _

</llo_original>
